<compile_context>
chip_gen: v5e
topology: v5e:2x2
jax: 0.10.0
libtpu: 0.0.40
codegen_flags: <defaults>
</compile_context>

<pallas_src>
import math
from functools import partial

import jax
import jax.numpy as jnp
from jax.experimental import pallas as pl
from jax.experimental.pallas import tpu as pltpu


def mha_kernel(x_ref, wqkv_ref, bqkv_ref, wo_ref, bo_ref, o_ref,
               *, n_heads, head_size):
    """One grid step handles one batch element.

    x_ref    : (1, S, D)   VMEM
    wqkv_ref : (D, 3*D)    VMEM  -- [Wq | Wk | Wv], columns ordered head-major
    bqkv_ref : (1, 3*D)    VMEM
    wo_ref   : (H, hs, D)  VMEM  -- W_o rows grouped per head (in x out)
    bo_ref   : (1, D)      VMEM
    o_ref    : (1, S, D)   VMEM
    """
    H, hs = n_heads, head_size
    x = x_ref[0]                                      # (S, D)
    S, D = x.shape
    inv_scale = 1.0 / math.sqrt(hs)

    # --- fused, lane-dense QKV projection: (S, D) @ (D, 3D) -------------------
    qkv = jnp.dot(x, wqkv_ref[...], preferred_element_type=jnp.float32)
    qkv = qkv + bqkv_ref[...]                         # (S, 3D)

    q = qkv[:, 0 * D:1 * D] * inv_scale               # fold softmax scale into Q
    k = qkv[:, 1 * D:2 * D]
    v = qkv[:, 2 * D:3 * D]

    # head-major views: (H, S, hs)
    q3 = jnp.transpose(q.reshape(S, H, hs), (1, 0, 2))
    k3 = jnp.transpose(k.reshape(S, H, hs), (1, 0, 2))
    v3 = jnp.transpose(v.reshape(S, H, hs), (1, 0, 2))

    # scores[h, i, j] = sum_e q3[h, i, e] * k3[h, j, e]   (no materialized k.T)
    scores = jax.lax.dot_general(
        q3, k3, (((2,), (2,)), ((0,), (0,))),
        preferred_element_type=jnp.float32)           # (H, S, S)

    m = jnp.max(scores, axis=-1, keepdims=True)
    p = jnp.exp(scores - m)
    denom = jnp.sum(p, axis=-1, keepdims=True)
    # approx=True would move this fully onto the EUP but loosens the 1e-5-ish
    # tolerance; kept exact to preserve module semantics.
    p = p * pl.reciprocal(denom, approx=False)

    # out[h, i, e] = sum_j p[h, i, j] * v3[h, j, e]
    out = jax.lax.dot_general(
        p, v3, (((2,), (1,)), ((0,), (0,))),
        preferred_element_type=jnp.float32)           # (H, S, hs)

    # output projection accumulated over heads (== cat(heads) @ W_o):
    # yh[h, i, f] = sum_e out[h, i, e] * wo[h, e, f];  y = sum_h yh
    yh = jax.lax.dot_general(
        out, wo_ref[...], (((2,), (1,)), ((0,), (0,))),
        preferred_element_type=jnp.float32)           # (H, S, D)
    y = jnp.sum(yh, axis=0) + bo_ref[...]             # (S, D)

    o_ref[0] = y.astype(o_ref.dtype)


def multi_head_attention(x, params, *, n_heads):
    """x: (B, S, D) float32. params: dict of stacked per-head weights/biases."""
    B, S, D = x.shape
    H = n_heads
    hs = D // n_heads

    # Pack per-head (H, D, hs) weights into lane-dense (D, H*hs) blocks whose
    # column order matches torch.cat over heads, then concat Q|K|V -> (D, 3D).
    def to_full(w):                                   # (H, D, hs) -> (D, H*hs)
        return jnp.transpose(w, (1, 0, 2)).reshape(D, H * hs)

    w_qkv = jnp.concatenate(
        [to_full(params["wq"]), to_full(params["wk"]), to_full(params["wv"])],
        axis=1)                                       # (D, 3D)
    b_qkv = jnp.concatenate(
        [params["bq"].reshape(-1), params["bk"].reshape(-1),
         params["bv"].reshape(-1)]).reshape(1, 3 * D)  # (1, 3D)
    wo3 = params["wo"].reshape(H, hs, D)              # W_o rows grouped per head
    bo = params["bo"].reshape(1, D)

    kernel = partial(mha_kernel, n_heads=H, head_size=hs)

    return pl.pallas_call(
        kernel,
        out_shape=jax.ShapeDtypeStruct((B, S, D), x.dtype),
        grid=(B,),
        in_specs=[
            pl.BlockSpec((1, S, D), lambda b: (b, 0, 0)),     # x
            pl.BlockSpec((D, 3 * D), lambda b: (0, 0)),       # fused W_qkv
            pl.BlockSpec((1, 3 * D), lambda b: (0, 0)),       # fused b_qkv
            pl.BlockSpec((H, hs, D), lambda b: (0, 0, 0)),    # W_o (per head)
            pl.BlockSpec((1, D), lambda b: (0, 0)),           # b_o
        ],
        out_specs=pl.BlockSpec((1, S, D), lambda b: (b, 0, 0)),
        compiler_params=pltpu.CompilerParams(
            dimension_semantics=("parallel",)),
    )(x, w_qkv, b_qkv, wo3, bo)


def reference_mha(x, params):
    """Pure-JAX reference replicating the PyTorch forward exactly."""
    hs = params["wq"].shape[-1]
    q = jnp.einsum("bsd,hde->bhse", x, params["wq"]) + params["bq"][None, :, None, :]
    k = jnp.einsum("bsd,hde->bhse", x, params["wk"]) + params["bk"][None, :, None, :]
    v = jnp.einsum("bsd,hde->bhse", x, params["wv"]) + params["bv"][None, :, None, :]
    att = jnp.einsum("bhqe,bhke->bhqk", q, k) / math.sqrt(hs)
    att = jax.nn.softmax(att, axis=-1)
    out = jnp.einsum("bhqk,bhke->bhqe", att, v)          # (B, H, S, hs)
    B, H, S, _ = out.shape
    cat = jnp.transpose(out, (0, 2, 1, 3)).reshape(B, S, H * hs)
    return cat @ params["wo"] + params["bo"][0]


def init_params(key, d_model, n_heads):
    hs = d_model // n_heads
    ks = jax.random.split(key, 8)
    scale = 1.0 / math.sqrt(d_model)
    return {
        "wq": jax.random.normal(ks[0], (n_heads, d_model, hs), jnp.float32) * scale,
        "bq": jax.random.normal(ks[1], (n_heads, hs), jnp.float32) * 0.01,
        "wk": jax.random.normal(ks[2], (n_heads, d_model, hs), jnp.float32) * scale,
        "bk": jax.random.normal(ks[3], (n_heads, hs), jnp.float32) * 0.01,
        "wv": jax.random.normal(ks[4], (n_heads, d_model, hs), jnp.float32) * scale,
        "bv": jax.random.normal(ks[5], (n_heads, hs), jnp.float32) * 0.01,
        "wo": jax.random.normal(ks[6], (d_model, d_model), jnp.float32) * scale,
        "bo": jax.random.normal(ks[7], (1, d_model), jnp.float32) * 0.01,
    }


if __name__ == "__main__":
    B, S, D, H = 2, 8, 32, 4     # batch, seq, d_model, n_heads  (head_size = 8)

    key = jax.random.PRNGKey(0)
    kx, kp = jax.random.split(key)
    x = jax.random.normal(kx, (B, S, D), jnp.float32)
    params = init_params(kp, D, H)

    out = multi_head_attention(x, params, n_heads=H)
    out = jax.block_until_ready(out)

    ref = reference_mha(x, params)
    assert out.shape == (B, S, D)
    assert jnp.allclose(out, ref, atol=1e-4, rtol=1e-4), "mismatch vs reference"

    print("KERNEL_OK")
</pallas_src>

<mosaic_0001>
module attributes {stable_mosaic.version = 11 : i64} {
  func.func @mha_kernel(%arg0: i32, %arg1: memref<1x8x32xf32, #tpu.memory_space<vmem>>, %arg2: memref<32x96xf32, #tpu.memory_space<vmem>>, %arg3: memref<1x96xf32, #tpu.memory_space<vmem>>, %arg4: memref<4x8x32xf32, #tpu.memory_space<vmem>>, %arg5: memref<1x32xf32, #tpu.memory_space<vmem>>, %arg6: memref<1x8x32xf32, #tpu.memory_space<vmem>>) attributes {dimension_semantics = [#tpu.dimension_semantics<parallel>], iteration_bounds = array<i64: 2>, scalar_prefetch = 0 : i64, scratch_operands = 0 : i64, tpu.core_type = #tpu.core_type<tc>, window_params = [{transform_indices = @transform_0, window_bounds = array<i64: 1, 8, 32>}, {pipeline_mode = #tpu.pipeline_mode<synchronous>, transform_indices = @transform_1, window_bounds = array<i64: 32, 96>}, {pipeline_mode = #tpu.pipeline_mode<synchronous>, transform_indices = @transform_2, window_bounds = array<i64: 1, 96>}, {pipeline_mode = #tpu.pipeline_mode<synchronous>, transform_indices = @transform_3, window_bounds = array<i64: 4, 8, 32>}, {pipeline_mode = #tpu.pipeline_mode<synchronous>, transform_indices = @transform_4, window_bounds = array<i64: 1, 32>}, {transform_indices = @transform_5, window_bounds = array<i64: 1, 8, 32>}]} {
    %c0 = arith.constant 0 : index
    %c0_0 = arith.constant 0 : index
    %c0_1 = arith.constant 0 : index
    %0 = vector.load %arg1[%c0, %c0_0, %c0_1] : memref<1x8x32xf32, #tpu.memory_space<vmem>>, vector<1x8x32xf32>
    %1 = vector.shape_cast %0 : vector<1x8x32xf32> to vector<8x32xf32>
    %c0_2 = arith.constant 0 : index
    %c0_3 = arith.constant 0 : index
    %2 = vector.load %arg2[%c0_2, %c0_3] : memref<32x96xf32, #tpu.memory_space<vmem>>, vector<32x96xf32>
    %cst = arith.constant dense<0.000000e+00> : vector<8x96xf32>
    %3 = tpu.matmul %1, %2, %cst {dimension_numbers = #tpu.dot_dimension_numbers<[1], [0], [0], [1], [0, 0, 1, 1], [], []>} : vector<8x32xf32>, vector<32x96xf32>, vector<8x96xf32> -> vector<8x96xf32>
    %c0_4 = arith.constant 0 : index
    %c0_5 = arith.constant 0 : index
    %4 = vector.load %arg3[%c0_4, %c0_5] : memref<1x96xf32, #tpu.memory_space<vmem>>, vector<1x96xf32>
    %5 = vector.broadcast %4 : vector<1x96xf32> to vector<8x96xf32>
    %6 = arith.addf %3, %5 : vector<8x96xf32>
    %7 = vector.extract_strided_slice %6 {offsets = [0, 0], sizes = [8, 32], strides = [1, 1]} : vector<8x96xf32> to vector<8x32xf32>
    %cst_6 = arith.constant 0.353553385 : f32
    %8 = vector.broadcast %cst_6 : f32 to vector<8x32xf32>
    %9 = arith.mulf %7, %8 : vector<8x32xf32>
    %10 = vector.extract_strided_slice %6 {offsets = [0, 32], sizes = [8, 32], strides = [1, 1]} : vector<8x96xf32> to vector<8x32xf32>
    %11 = vector.extract_strided_slice %6 {offsets = [0, 64], sizes = [8, 32], strides = [1, 1]} : vector<8x96xf32> to vector<8x32xf32>
    %12 = vector.shape_cast %9 : vector<8x32xf32> to vector<8x4x8xf32>
    %13 = tpu.transpose %12, [1, 0, 2] : vector<8x4x8xf32> -> vector<4x8x8xf32>
    %14 = vector.shape_cast %10 : vector<8x32xf32> to vector<8x4x8xf32>
    %15 = tpu.transpose %14, [1, 0, 2] : vector<8x4x8xf32> -> vector<4x8x8xf32>
    %16 = vector.shape_cast %11 : vector<8x32xf32> to vector<8x4x8xf32>
    %17 = tpu.transpose %16, [1, 0, 2] : vector<8x4x8xf32> -> vector<4x8x8xf32>
    %cst_7 = arith.constant dense<0.000000e+00> : vector<4x8x8xf32>
    %18 = tpu.matmul %13, %15, %cst_7 {dimension_numbers = #tpu.dot_dimension_numbers<[2], [2], [1], [1], [0, 0, 0, 1, 1, 1], [0], [0]>} : vector<4x8x8xf32>, vector<4x8x8xf32>, vector<4x8x8xf32> -> vector<4x8x8xf32>
    %cst_8 = arith.constant dense<0xFF800000> : vector<4x8xf32>
    %19 = vector.multi_reduction <maximumf>, %18, %cst_8 [2] : vector<4x8x8xf32> to vector<4x8xf32>
    %20 = vector.shape_cast %19 : vector<4x8xf32> to vector<4x8x1xf32>
    %21 = vector.broadcast %20 : vector<4x8x1xf32> to vector<4x8x8xf32>
    %22 = arith.subf %18, %21 : vector<4x8x8xf32>
    %23 = math.exp %22 : vector<4x8x8xf32>
    %cst_9 = arith.constant dense<0.000000e+00> : vector<4x8xf32>
    %24 = vector.multi_reduction <add>, %23, %cst_9 [2] : vector<4x8x8xf32> to vector<4x8xf32>
    %25 = vector.shape_cast %24 : vector<4x8xf32> to vector<4x8x1xf32>
    %26 = tpu.reciprocal %25 : vector<4x8x1xf32> -> vector<4x8x1xf32>
    %27 = vector.broadcast %26 : vector<4x8x1xf32> to vector<4x8x8xf32>
    %28 = arith.mulf %23, %27 : vector<4x8x8xf32>
    %cst_10 = arith.constant dense<0.000000e+00> : vector<4x8x8xf32>
    %29 = tpu.matmul %28, %17, %cst_10 {dimension_numbers = #tpu.dot_dimension_numbers<[2], [1], [1], [2], [0, 0, 0, 1, 1, 2], [0], [0]>} : vector<4x8x8xf32>, vector<4x8x8xf32>, vector<4x8x8xf32> -> vector<4x8x8xf32>
    %c0_11 = arith.constant 0 : index
    %c0_12 = arith.constant 0 : index
    %c0_13 = arith.constant 0 : index
    %30 = vector.load %arg4[%c0_11, %c0_12, %c0_13] : memref<4x8x32xf32, #tpu.memory_space<vmem>>, vector<4x8x32xf32>
    %cst_14 = arith.constant dense<0.000000e+00> : vector<4x8x32xf32>
    %31 = tpu.matmul %29, %30, %cst_14 {dimension_numbers = #tpu.dot_dimension_numbers<[2], [1], [1], [2], [0, 0, 0, 1, 1, 2], [0], [0]>} : vector<4x8x8xf32>, vector<4x8x32xf32>, vector<4x8x32xf32> -> vector<4x8x32xf32>
    %cst_15 = arith.constant dense<0.000000e+00> : vector<8x32xf32>
    %32 = vector.multi_reduction <add>, %31, %cst_15 [0] : vector<4x8x32xf32> to vector<8x32xf32>
    %c0_16 = arith.constant 0 : index
    %c0_17 = arith.constant 0 : index
    %33 = vector.load %arg5[%c0_16, %c0_17] : memref<1x32xf32, #tpu.memory_space<vmem>>, vector<1x32xf32>
    %34 = vector.broadcast %33 : vector<1x32xf32> to vector<8x32xf32>
    %35 = arith.addf %32, %34 : vector<8x32xf32>
    %c0_18 = arith.constant 0 : index
    %c0_19 = arith.constant 0 : index
    %c0_20 = arith.constant 0 : index
    %36 = vector.load %arg6[%c0_18, %c0_19, %c0_20] : memref<1x8x32xf32, #tpu.memory_space<vmem>>, vector<1x8x32xf32>
    %37 = vector.shape_cast %36 : vector<1x8x32xf32> to vector<8x32xf32>
    %38 = vector.shape_cast %35 : vector<8x32xf32> to vector<1x8x32xf32>
    tpu.vector_store %arg6[%c0_18, %c0_19, %c0_20], %38 {strides = array<i32>} : memref<1x8x32xf32, #tpu.memory_space<vmem>>, vector<1x8x32xf32>,
    return
  }
  func.func @transform_0(%arg0: i32) -> (i32, i32, i32) {
    %c0_i32 = arith.constant 0 : i32
    %c0_i32_0 = arith.constant 0 : i32
    %c0_i32_1 = arith.constant 0 : i32
    return %arg0, %c0_i32, %c0_i32_0 : i32, i32, i32
  }
  func.func @transform_1(%arg0: i32) -> (i32, i32) {
    %c0_i32 = arith.constant 0 : i32
    %c0_i32_0 = arith.constant 0 : i32
    %c0_i32_1 = arith.constant 0 : i32
    return %c0_i32, %c0_i32_0 : i32, i32
  }
  func.func @transform_2(%arg0: i32) -> (i32, i32) {
    %c0_i32 = arith.constant 0 : i32
    %c0_i32_0 = arith.constant 0 : i32
    %c0_i32_1 = arith.constant 0 : i32
    return %c0_i32, %c0_i32_0 : i32, i32
  }
  func.func @transform_3(%arg0: i32) -> (i32, i32, i32) {
    %c0_i32 = arith.constant 0 : i32
    %c0_i32_0 = arith.constant 0 : i32
    %c0_i32_1 = arith.constant 0 : i32
    %c0_i32_2 = arith.constant 0 : i32
    return %c0_i32, %c0_i32_0, %c0_i32_1 : i32, i32, i32
  }
  func.func @transform_4(%arg0: i32) -> (i32, i32) {
    %c0_i32 = arith.constant 0 : i32
    %c0_i32_0 = arith.constant 0 : i32
    %c0_i32_1 = arith.constant 0 : i32
    return %c0_i32, %c0_i32_0 : i32, i32
  }
  func.func @transform_5(%arg0: i32) -> (i32, i32, i32) {
    %c0_i32 = arith.constant 0 : i32
    %c0_i32_0 = arith.constant 0 : i32
    %c0_i32_1 = arith.constant 0 : i32
    return %arg0, %c0_i32, %c0_i32_0 : i32, i32, i32
  }
}

</mosaic_0001>

<llo_original>
// kernel: tpu_custom_call.1
$region0: #{tpu_custom_call.1}
  #allocation0 [shape = 'u32[]', space=smem, size = 0x4, offset = 0x4, fixed_abs, tag = 'smem constant byte address 0x4 - core index']
  #allocation1 [shape = 'u32[72,128]{1,0:T(1,128)}', space=vmem, size = 0x9000, scoped, tag = 'internal scratch']
  %s0 = inlined_call_operand.hbm [shape: f32[2,8,32], index: 0, kind: input, shape index: {}]
  %s1 = inlined_call_operand.hbm [shape: f32[32,96], index: 1, kind: input, shape index: {}]
  %s2 = inlined_call_operand.vmem [shape: f32[1,96], index: 2, kind: input, shape index: {}]
  %s3 = inlined_call_operand.hbm [shape: f32[4,8,32], index: 3, kind: input, shape index: {}]
  %s4 = inlined_call_operand.vmem [shape: f32[1,32], index: 4, kind: input, shape index: {}]
  %s5 = inlined_call_operand.hbm [shape: f32[2,8,32], index: 5, kind: output, shape index: {}]
  %s6 = sld [smem:[#allocation0]]
  $region65: #{tpu_custom_call.1} parent=0
    _
  %s8 = ssub.s32 1, %s6
  %s9 = scalar_select 0, %s8, %s6
  $region1: #{tpu_custom_call.1} parent=0
    #allocation2 [shape = 'u8[8192]{0}', space=vmem, size = 0x2000, scoped, tag = 'input window, operand 0']
    #allocation3 [shape = 's32[2]{0}', space=sflag, size = 0x8, scoped, tag = 'scoped memory for tpu_custom_call.1']
    #allocation4 [shape = 's32[2]{0}', space=sflag, size = 0x8, scoped, tag = 'scoped memory for tpu_custom_call.1']
    #allocation5 [shape = 'u8[16384]{0}', space=vmem, size = 0x4000, scoped, tag = 'input window, operand 1, single buffered']
    #allocation6 [shape = 's32[1]{0}', space=sflag, size = 0x4, scoped, tag = 'scoped memory for tpu_custom_call.1']
    #allocation7 [shape = 'u8[16384]{0}', space=vmem, size = 0x4000, scoped, tag = 'input window, operand 3, single buffered']
    #allocation8 [shape = 'u8[8192]{0}', space=vmem, size = 0x2000, scoped, tag = 'output window, operand 0']
    %10 = vsyncpa [#allocation3], 0
    %s11 = scalar_lea.sflag [#allocation3], 1
    %12 = vsyncpa %s11, 0
    %13 = vsyncpa [#allocation6], 0
    %14 = vsyncpa [#allocation4], 0
    %s15 = scalar_lea.sflag [#allocation4], 1
    %16 = vsyncpa %s15, 0
    loop: start=0, step=1, limit=4
    $region2: #{tpu_custom_call.1} parent=1 // loop_pre_header
      _
    $region3: #{tpu_custom_call.1} parent=1 // loop_header
      %s18 = sphi 0, %s22
      %p19 = scmp.ge.s32.totalorder %s18, 4
      %s28 = sphi 0, %s30
      %s31 = sphi 0, %s28
      %s32 = sphi 0, %s31
      %s48 = sphi 0, %s32
      %s52 = sphi 0, %s52
      %s54 = sphi 0, %s52
      %s55 = sphi 0, %s54
      %s69 = sphi 0, %s55
      %s73 = sphi 0, %s73
      %s75 = sphi 0, %s73
      %s76 = sphi 0, %s75
      %s90 = sphi 0, %s76
      %s94 = sphi 0, %s94
      %s96 = sphi 0, %s94
      %s97 = sphi 0, %s96
      %s111 = sphi 0, %s97
      %s115 = sphi 0, %s115
      %s117 = sphi 0, %s115
      %s118 = sphi 0, %s117
      %s132 = sphi 0, %s118
      %s138 = sphi 0, %s140
      %s141 = sphi 0, %s138
      %s142 = sphi 0, %s141
      %s158 = sphi 0, %s142
    $region4: #{tpu_custom_call.1} parent=1 // loop_header_branch
      %21 = sbr.rel (%p19) target = $region8
    $region5: #{tpu_custom_call.1} parent=1 // loop_body
      %s23 = ssub.s32 %s18, 1
      %s24 = ssub.s32 %s18, 2
      %s25 = sadd.s32 %s18, 1
      %s26 = ssub.s32 %s18, %s25
      %p27 = scmp.eq.s32.totalorder %s26, 0
      %s29 = sadd.s32 %s28, 1
      %s30 = scalar_select %p27, %s28, %s29
      %p33 = pneg %p27
      %p34 = scmp.eq.s32.totalorder %s18, 1
      %p35 = por %p33, %p34
      %p36 = scmp.ne.s32.totalorder %s28, %s31
      %p37 = scmp.eq.s32.totalorder %s18, 0
      %p38 = por %p36, %p37
      %p39 = scmp.ne.s32.totalorder %s28, %s31
      %p40 = scmp.eq.s32.totalorder %s23, 1
      %p41 = por %p39, %p40
      %p42 = scmp.ne.s32.totalorder %s31, %s32
      %p43 = scmp.eq.s32.totalorder %s23, 0
      %p44 = por %p42, %p43
      %p45 = scmp.ne.s32.totalorder %s31, %s32
      %p46 = scmp.eq.s32.totalorder %s24, 1
      %p47 = por %p45, %p46
      %p49 = scmp.ne.s32.totalorder %s32, %s48
      %p50 = scmp.eq.s32.totalorder %s24, 0
      %p51 = por %p49, %p50
      %s53 = sadd.s32 %s52, 1
      %p56 = scmp.eq.s32.totalorder %s18, 1
      %p57 = scmp.ne.s32.totalorder %s52, %s54
      %p58 = scmp.eq.s32.totalorder %s18, 0
      %p59 = por %p57, %p58
      %p60 = scmp.ne.s32.totalorder %s52, %s54
      %p61 = scmp.eq.s32.totalorder %s23, 1
      %p62 = por %p60, %p61
      %p63 = scmp.ne.s32.totalorder %s54, %s55
      %p64 = scmp.eq.s32.totalorder %s23, 0
      %p65 = por %p63, %p64
      %p66 = scmp.ne.s32.totalorder %s54, %s55
      %p67 = scmp.eq.s32.totalorder %s24, 1
      %p68 = por %p66, %p67
      %p70 = scmp.ne.s32.totalorder %s55, %s69
      %p71 = scmp.eq.s32.totalorder %s24, 0
      %p72 = por %p70, %p71
      %s74 = sadd.s32 %s73, 1
      %p77 = scmp.eq.s32.totalorder %s18, 1
      %p78 = scmp.ne.s32.totalorder %s73, %s75
      %p79 = scmp.eq.s32.totalorder %s18, 0
      %p80 = por %p78, %p79
      %p81 = scmp.ne.s32.totalorder %s73, %s75
      %p82 = scmp.eq.s32.totalorder %s23, 1
      %p83 = por %p81, %p82
      %p84 = scmp.ne.s32.totalorder %s75, %s76
      %p85 = scmp.eq.s32.totalorder %s23, 0
      %p86 = por %p84, %p85
      %p87 = scmp.ne.s32.totalorder %s75, %s76
      %p88 = scmp.eq.s32.totalorder %s24, 1
      %p89 = por %p87, %p88
      %p91 = scmp.ne.s32.totalorder %s76, %s90
      %p92 = scmp.eq.s32.totalorder %s24, 0
      %p93 = por %p91, %p92
      %s95 = sadd.s32 %s94, 1
      %p98 = scmp.eq.s32.totalorder %s18, 1
      %p99 = scmp.ne.s32.totalorder %s94, %s96
      %p100 = scmp.eq.s32.totalorder %s18, 0
      %p101 = por %p99, %p100
      %p102 = scmp.ne.s32.totalorder %s94, %s96
      %p103 = scmp.eq.s32.totalorder %s23, 1
      %p104 = por %p102, %p103
      %p105 = scmp.ne.s32.totalorder %s96, %s97
      %p106 = scmp.eq.s32.totalorder %s23, 0
      %p107 = por %p105, %p106
      %p108 = scmp.ne.s32.totalorder %s96, %s97
      %p109 = scmp.eq.s32.totalorder %s24, 1
      %p110 = por %p108, %p109
      %p112 = scmp.ne.s32.totalorder %s97, %s111
      %p113 = scmp.eq.s32.totalorder %s24, 0
      %p114 = por %p112, %p113
      %s116 = sadd.s32 %s115, 1
      %p119 = scmp.eq.s32.totalorder %s18, 1
      %p120 = scmp.ne.s32.totalorder %s115, %s117
      %p121 = scmp.eq.s32.totalorder %s18, 0
      %p122 = por %p120, %p121
      %p123 = scmp.ne.s32.totalorder %s115, %s117
      %p124 = scmp.eq.s32.totalorder %s23, 1
      %p125 = por %p123, %p124
      %p126 = scmp.ne.s32.totalorder %s117, %s118
      %p127 = scmp.eq.s32.totalorder %s23, 0
      %p128 = por %p126, %p127
      %p129 = scmp.ne.s32.totalorder %s117, %s118
      %p130 = scmp.eq.s32.totalorder %s24, 1
      %p131 = por %p129, %p130
      %p133 = scmp.ne.s32.totalorder %s118, %s132
      %p134 = scmp.eq.s32.totalorder %s24, 0
      %p135 = por %p133, %p134
      %s136 = ssub.s32 %s18, %s25
      %p137 = scmp.eq.s32.totalorder %s136, 0
      %s139 = sadd.s32 %s138, 1
      %s140 = scalar_select %p137, %s138, %s139
      %p143 = pneg %p137
      %p144 = scmp.eq.s32.totalorder %s18, 1
      %p145 = por %p143, %p144
      %p146 = scmp.ne.s32.totalorder %s138, %s141
      %p147 = scmp.eq.s32.totalorder %s18, 0
      %p148 = por %p146, %p147
      %p149 = scmp.ne.s32.totalorder %s138, %s141
      %p150 = scmp.eq.s32.totalorder %s23, 1
      %p151 = por %p149, %p150
      %p152 = scmp.ne.s32.totalorder %s141, %s142
      %p153 = scmp.eq.s32.totalorder %s23, 0
      %p154 = por %p152, %p153
      %p155 = scmp.ne.s32.totalorder %s141, %s142
      %p156 = scmp.eq.s32.totalorder %s24, 1
      %p157 = por %p155, %p156
      %p159 = scmp.ne.s32.totalorder %s142, %s158
      %p160 = scmp.eq.s32.totalorder %s24, 0
      %p161 = por %p159, %p160
      %p162 = scmp.le.s32.totalorder 1, %s18
      %p163 = scmp.lt.s32.totalorder %s18, 3
      %p164 = pnand %p162, %p163
      %p165 = pneg %p164
      // Predicated region
      $region9: #{tpu_custom_call.1} parent=5 // pred_check
        _
      $region10: #{tpu_custom_call.1} parent=5 // pred_check_branch
        %167 = sbr.rel (%p164) target = $region12
      $region11: #{tpu_custom_call.1} parent=5 // pred_region
        %s168 = ssub.s32 %s18, 1
        // Predicated region
        $region13: #{tpu_custom_call.1} parent=11 // pred_check
          %p169 = pneg %p65
        $region14: #{tpu_custom_call.1} parent=11 // pred_check_branch
          %171 = sbr.rel (%p169) target = $region16
        $region15: #{tpu_custom_call.1} parent=11 // pred_region
          %173 = vsyncadd [#allocation6], 0
          %s174 = sshll.u32 %s1, 4
          %s175 = int_to_ptr.hbm [resolvable:$true] %s174
          %s176 = sshll.u32 [#allocation5], 4
          %s177 = int_to_ptr.vmem [resolvable:$true] %s176
          %182 = dma.hbm_to_vmem [thread:$0]  %s175, 512, %s177, [#allocation6], 128, 128, 8
        $region16: #{tpu_custom_call.1} parent=11 // pred_fallthru
          _
        // Predicated region
        $region17: #{tpu_custom_call.1} parent=11 // pred_check
          %p183 = pneg %p86
        $region18: #{tpu_custom_call.1} parent=11 // pred_check_branch
          %185 = sbr.rel (%p183) target = $region20
        $region19: #{tpu_custom_call.1} parent=11 // pred_region
          _
        $region20: #{tpu_custom_call.1} parent=11 // pred_fallthru
          _
        // Predicated region
        $region21: #{tpu_custom_call.1} parent=11 // pred_check
          %p186 = pneg %p107
        $region22: #{tpu_custom_call.1} parent=11 // pred_check_branch
          %188 = sbr.rel (%p186) target = $region24
        $region23: #{tpu_custom_call.1} parent=11 // pred_region
          %190 = vsyncadd [#allocation6], 0
          %s191 = sshll.u32 %s3, 4
          %s192 = int_to_ptr.hbm [resolvable:$true] %s191
          %s193 = sshll.u32 [#allocation7], 4
          %s194 = int_to_ptr.vmem [resolvable:$true] %s193
          %199 = dma.hbm_to_vmem [thread:$0]  %s192, 512, %s194, [#allocation6], 128, 128, 8
        $region24: #{tpu_custom_call.1} parent=11 // pred_fallthru
          _
        // Predicated region
        $region25: #{tpu_custom_call.1} parent=11 // pred_check
          %p200 = pneg %p128
        $region26: #{tpu_custom_call.1} parent=11 // pred_check_branch
          %202 = sbr.rel (%p200) target = $region28
        $region27: #{tpu_custom_call.1} parent=11 // pred_region
          _
        $region28: #{tpu_custom_call.1} parent=11 // pred_fallthru
          _
      $region12: #{tpu_custom_call.1} parent=5 // pred_fallthru
        _
      %p203 = scmp.lt.s32.totalorder %s18, 2
      // Predicated region
      $region29: #{tpu_custom_call.1} parent=5 // pred_check
        %p204 = pneg %p203
      $region30: #{tpu_custom_call.1} parent=5 // pred_check_branch
        %206 = sbr.rel (%p204) target = $region32
      $region31: #{tpu_custom_call.1} parent=5 // pred_region
        // Predicated region
        $region33: #{tpu_custom_call.1} parent=31 // pred_check
          %p207 = pneg %p38
        $region34: #{tpu_custom_call.1} parent=31 // pred_check_branch
          %209 = sbr.rel (%p207) target = $region36
        $region35: #{tpu_custom_call.1} parent=31 // pred_region
          %s210 = sand.u32 %s28, 1
          %s211 = scalar_lea.sflag [#allocation3], %s210
          %s212 = sand.u32 %s28, 1
          %s213 = smul.addr %s212, 8
          %s214 = scalar_lea.vmem [#allocation2], %s213
          %216 = vsyncadd %s211, 0
          %s217 = smul.addr %s18, 8
          %s218 = scalar_lea.hbm %s0, %s217
          %s220 = sshll.u32 %s218, 4
          %s221 = int_to_ptr.hbm [resolvable:$true] %s220
          %s222 = sshll.u32 %s214, 4
          %s223 = int_to_ptr.vmem [resolvable:$true] %s222
          %225 = dma.hbm_to_vmem [thread:$0]  %s221, 128, %s223, %s211
        $region36: #{tpu_custom_call.1} parent=31 // pred_fallthru
          _
      $region32: #{tpu_custom_call.1} parent=5 // pred_fallthru
        _
      %p226 = scmp.le.s32.totalorder 1, %s18
      %p227 = scmp.lt.s32.totalorder %s18, 3
      %p228 = pnand %p226, %p227
      %p229 = pneg %p228
      // Predicated region
      $region37: #{tpu_custom_call.1} parent=5 // pred_check
        _
      $region38: #{tpu_custom_call.1} parent=5 // pred_check_branch
        %231 = sbr.rel (%p228) target = $region40
      $region39: #{tpu_custom_call.1} parent=5 // pred_region
        %s232 = ssub.s32 %s18, 1
        %s233 = sand.u32 %s31, 1
        %s234 = scalar_lea.sflag [#allocation3], %s233
        %s235 = sand.u32 %s31, 1
        %s236 = smul.addr %s235, 8
        %s237 = scalar_lea.vmem [#allocation2], %s236
        // Predicated region
        $region41: #{tpu_custom_call.1} parent=39 // pred_check
          %p238 = pneg %p44
        $region42: #{tpu_custom_call.1} parent=39 // pred_check_branch
          %240 = sbr.rel (%p238) target = $region44
        $region43: #{tpu_custom_call.1} parent=39 // pred_region
          %242 = dma.done %s234, 128
        $region44: #{tpu_custom_call.1} parent=39 // pred_fallthru
          _
        // Predicated region
        $region45: #{tpu_custom_call.1} parent=39 // pred_check
          %p243 = pneg %p65
        $region46: #{tpu_custom_call.1} parent=39 // pred_check_branch
          %245 = sbr.rel (%p243) target = $region48
        $region47: #{tpu_custom_call.1} parent=39 // pred_region
          %247 = dma.done [#allocation6], 512
        $region48: #{tpu_custom_call.1} parent=39 // pred_fallthru
          _
        // Predicated region
        $region49: #{tpu_custom_call.1} parent=39 // pred_check
          %p248 = pneg %p107
        $region50: #{tpu_custom_call.1} parent=39 // pred_check_branch
          %250 = sbr.rel (%p248) target = $region52
        $region51: #{tpu_custom_call.1} parent=39 // pred_region
          %252 = dma.done [#allocation6], 512
        $region52: #{tpu_custom_call.1} parent=39 // pred_fallthru
          _
        %s253 = sand.u32 %s31, 1
        %s254 = scalar_lea.sflag [#allocation3], %s253
        %s255 = sand.u32 %s31, 1
        %s256 = smul.addr %s255, 8
        %s257 = scalar_lea.vmem [#allocation2], %s256
        %p258 = pneg %p44
        %p259 = pneg %p41
        %p260 = pneg %p65
        %p261 = pneg %p62
        %p262 = pneg %p86
        %p263 = pneg %p83
        %p264 = pneg %p107
        %p265 = pneg %p104
        %p266 = pneg %p128
        %p267 = pneg %p125
        %p268 = pneg %p154
        %p269 = pneg %p151
        %s270 = sand.u32 %s141, 1
        %s271 = scalar_lea.sflag [#allocation4], %s270
        %s272 = sand.u32 %s141, 1
        %s273 = smul.addr %s272, 8
        %s274 = scalar_lea.vmem [#allocation8], %s273
        %v275 = vld [vmem:[%s237] sm:$0xff]
        %v276 = vld [vmem:[#allocation5] sm:$0xff]
        %v277 = vld [vmem:[#allocation5 + $0x8] sm:$0xff]
        %v278 = vld [vmem:[#allocation5 + $0x10] sm:$0xff]
        %v279 = vld [vmem:[#allocation5 + $0x18] sm:$0xff]
        %v280 = vld [vmem:[%s2] sm:$0x1]
        %v282 = vperm.slane %v280, 0
        %vm284 = vcmask 261120
        %v286 = vsel %vm284, %v275, 0
        %288 = vmatpush.msra.mxu0 0.0
        %289 = vmatpush.msra.mxu0 0.0
        %290 = vmatpush.msra.mxu0 0.0
        %291 = vmatpush.msra.mxu0 0.0
        %292 = vmatpush.msra.mxu0 0.0
        %293 = vmatpush.msra.mxu0 0.0
        %294 = vmatpush.msra.mxu0 0.0
        %295 = vmatpush.msra.mxu0 0.0
        %296 = vmatpush.msra.mxu0 0.0
        %297 = vmatpush.msra.mxu0 0.0
        %298 = vmatpush.msra.mxu0 0.0
        %299 = vmatpush.msra.mxu0 0.0
        %300 = vmatpush.msra.mxu0 %v279
        %301 = vmatpush.msra.mxu0 %v278
        %302 = vmatpush.msra.mxu0 %v277
        %303 = vmatpush.msra.mxu0 %v276
        %304 = vmatmul.f32.gmra.mxu0 %v286
        %v305 = vpop.f32.mrf.mxu0
        %v306 = vadd.f32 %v282, %v305
        %307 = vdwg.mxu0
        %v308 = vmul.f32 %v306, 0.35355338
        %310 = vrot.lane.b32.xlu0 %v308, 120
        %v311 = vpop.permute.xlu0 %310
        %313 = vrot.lane.b32.xlu0 %v308, 112
        %v314 = vpop.permute.xlu0 %313
        %316 = vrot.lane.b32.xlu0 %v308, 104
        %v317 = vpop.permute.xlu0 %316
        %v319 = vrot.slane %v314, 4
        %vm320 = vcmask 1047556
        %v321 = vsel %vm320, %v319, %v308
        %v322 = vrot.slane %v308, 4
        %v323 = vsel %vm320, %v314, %v322
        %v325 = vunpack.c.l.s4 1983009808
        %v326 = vunpack.c.0.s8 %v325
        %v327 = vperm.slane %v321, %v326
        %v329 = vunpack.c.l.s4 1983009808
        %v330 = vunpack.c.0.s8 %v329
        %v331 = vperm.slane %v323, %v330
        %v332 = vrot.slane %v317, 4
        %v333 = vsel %vm320, %v332, %v311
        %v334 = vrot.slane %v311, 4
        %v335 = vsel %vm320, %v317, %v334
        %v337 = vunpack.c.l.s4 1983009808
        %v338 = vunpack.c.0.s8 %v337
        %v339 = vperm.slane %v333, %v338
        %v341 = vunpack.c.l.s4 1983009808
        %v342 = vunpack.c.0.s8 %v341
        %v343 = vperm.slane %v335, %v342
        %v344 = vrot.slane %v339, 4
        %v345 = vsel %vm320, %v344, %v327
        %v346 = vrot.slane %v327, 4
        %v347 = vsel %vm320, %v339, %v346
        %v349 = vunpack.c.l.s4 1934713408
        %v350 = vunpack.c.0.s8 %v349
        %v351 = vperm.slane %v345, %v350
        %v353 = vunpack.c.l.s4 1934713408
        %v354 = vunpack.c.0.s8 %v353
        %v355 = vperm.slane %v347, %v354
        %v356 = vrot.slane %v343, 4
        %v357 = vsel %vm320, %v356, %v331
        %v358 = vrot.slane %v331, 4
        %v359 = vsel %vm320, %v343, %v358
        %v361 = vunpack.c.l.s4 1934713408
        %v362 = vunpack.c.0.s8 %v361
        %v363 = vperm.slane %v357, %v362
        %v365 = vunpack.c.l.s4 1934713408
        %v366 = vunpack.c.0.s8 %v365
        %v367 = vperm.slane %v359, %v366
        %v368 = vrot.slane %v351, 4
        %v369 = vsel %vm320, 0.0, %v368
        %v370 = vrot.slane %v355, 4
        %v371 = vsel %vm320, 0.0, %v370
        %v372 = vrot.slane %v363, 4
        %v373 = vsel %vm320, 0.0, %v372
        %v374 = vrot.slane %v367, 4
        %v375 = vsel %vm320, 0.0, %v374
        %v376 = vsel %vm320, %v370, %v351
        %v378 = vunpack.c.l.s4 1983009808
        %v379 = vunpack.c.0.s8 %v378
        %v380 = vperm.slane %v376, %v379
        %v381 = vrot.slane %v371, 4
        %v382 = vsel %vm320, %v381, %v369
        %v384 = vunpack.c.l.s4 1983009808
        %v385 = vunpack.c.0.s8 %v384
        %v386 = vperm.slane %v382, %v385
        %v387 = vsel %vm320, %v374, %v363
        %v389 = vunpack.c.l.s4 1983009808
        %v390 = vunpack.c.0.s8 %v389
        %v391 = vperm.slane %v387, %v390
        %v392 = vrot.slane %v375, 4
        %v393 = vsel %vm320, %v392, %v373
        %v395 = vunpack.c.l.s4 1983009808
        %v396 = vunpack.c.0.s8 %v395
        %v397 = vperm.slane %v393, %v396
        %v398 = vrot.slane %v386, 4
        %v399 = vsel %vm320, %v398, %v380
        %v400 = vrot.slane %v380, 4
        %v401 = vsel %vm320, %v386, %v400
        %v403 = vunpack.c.l.s4 1934713408
        %v404 = vunpack.c.0.s8 %v403
        %v405 = vperm.slane %v399, %v404
        %v407 = vunpack.c.l.s4 1934713408
        %v408 = vunpack.c.0.s8 %v407
        %v409 = vperm.slane %v401, %v408
        %v410 = vrot.slane %v397, 4
        %v411 = vsel %vm320, %v410, %v391
        %v412 = vrot.slane %v391, 4
        %v413 = vsel %vm320, %v397, %v412
        %v415 = vunpack.c.l.s4 1934713408
        %v416 = vunpack.c.0.s8 %v415
        %v417 = vperm.slane %v411, %v416
        %v419 = vunpack.c.l.s4 1934713408
        %v420 = vunpack.c.0.s8 %v419
        %v421 = vperm.slane %v413, %v420
        %v422 = vrot.slane %v417, 4
        %v423 = vsel %vm320, %v422, %v405
        %v424 = vrot.slane %v405, 4
        %v425 = vsel %vm320, %v417, %v424
        %v426 = vrot.slane %v421, 4
        %v427 = vsel %vm320, %v426, %v409
        %v428 = vrot.slane %v409, 4
        %v429 = vsel %vm320, %v421, %v428
        %431 = vrot.lane.b32.xlu0 %v306, 120
        %v432 = vpop.permute.xlu0 %431
        %433 = vrot.lane.b32.xlu0 %v306, 112
        %v434 = vpop.permute.xlu0 %433
        %435 = vrot.lane.b32.xlu0 %v306, 104
        %v436 = vpop.permute.xlu0 %435
        %437 = vrot.lane.b32.xlu0 %v306, 96
        %v438 = vpop.permute.xlu0 %437
        %439 = vrot.lane.b32.xlu0 %v432, 96
        %v440 = vpop.permute.xlu0 %439
        %441 = vrot.lane.b32.xlu0 %v434, 96
        %v442 = vpop.permute.xlu0 %441
        %443 = vrot.lane.b32.xlu0 %v436, 96
        %v444 = vpop.permute.xlu0 %443
        %v449 = vrot.slane %v442, 4
        %v450 = vsel %vm320, %v449, %v438
        %v451 = vrot.slane %v438, 4
        %v452 = vsel %vm320, %v442, %v451
        %v454 = vunpack.c.l.s4 1983009808
        %v455 = vunpack.c.0.s8 %v454
        %v456 = vperm.slane %v450, %v455
        %v458 = vunpack.c.l.s4 1983009808
        %v459 = vunpack.c.0.s8 %v458
        %v460 = vperm.slane %v452, %v459
        %v461 = vrot.slane %v444, 4
        %v462 = vsel %vm320, %v461, %v440
        %v463 = vrot.slane %v440, 4
        %v464 = vsel %vm320, %v444, %v463
        %v466 = vunpack.c.l.s4 1983009808
        %v467 = vunpack.c.0.s8 %v466
        %v468 = vperm.slane %v462, %v467
        %v470 = vunpack.c.l.s4 1983009808
        %v471 = vunpack.c.0.s8 %v470
        %v472 = vperm.slane %v464, %v471
        %v473 = vrot.slane %v468, 4
        %v474 = vsel %vm320, %v473, %v456
        %v475 = vrot.slane %v456, 4
        %v476 = vsel %vm320, %v468, %v475
        %v478 = vunpack.c.l.s4 1934713408
        %v479 = vunpack.c.0.s8 %v478
        %v480 = vperm.slane %v474, %v479
        %v482 = vunpack.c.l.s4 1934713408
        %v483 = vunpack.c.0.s8 %v482
        %v484 = vperm.slane %v476, %v483
        %v485 = vrot.slane %v472, 4
        %v486 = vsel %vm320, %v485, %v460
        %v487 = vrot.slane %v460, 4
        %v488 = vsel %vm320, %v472, %v487
        %v490 = vunpack.c.l.s4 1934713408
        %v491 = vunpack.c.0.s8 %v490
        %v492 = vperm.slane %v486, %v491
        %v494 = vunpack.c.l.s4 1934713408
        %v495 = vunpack.c.0.s8 %v494
        %v496 = vperm.slane %v488, %v495
        %v497 = vrot.slane %v480, 4
        %v498 = vsel %vm320, 0.0, %v497
        %v499 = vrot.slane %v484, 4
        %v500 = vsel %vm320, 0.0, %v499
        %v501 = vrot.slane %v492, 4
        %v502 = vsel %vm320, 0.0, %v501
        %v503 = vrot.slane %v496, 4
        %v504 = vsel %vm320, 0.0, %v503
        %v505 = vsel %vm320, %v499, %v480
        %v507 = vunpack.c.l.s4 1983009808
        %v508 = vunpack.c.0.s8 %v507
        %v509 = vperm.slane %v505, %v508
        %v510 = vrot.slane %v500, 4
        %v511 = vsel %vm320, %v510, %v498
        %v513 = vunpack.c.l.s4 1983009808
        %v514 = vunpack.c.0.s8 %v513
        %v515 = vperm.slane %v511, %v514
        %v516 = vsel %vm320, %v503, %v492
        %v518 = vunpack.c.l.s4 1983009808
        %v519 = vunpack.c.0.s8 %v518
        %v520 = vperm.slane %v516, %v519
        %v521 = vrot.slane %v504, 4
        %v522 = vsel %vm320, %v521, %v502
        %v524 = vunpack.c.l.s4 1983009808
        %v525 = vunpack.c.0.s8 %v524
        %v526 = vperm.slane %v522, %v525
        %v527 = vrot.slane %v515, 4
        %v528 = vsel %vm320, %v527, %v509
        %v529 = vrot.slane %v509, 4
        %v530 = vsel %vm320, %v515, %v529
        %v532 = vunpack.c.l.s4 1934713408
        %v533 = vunpack.c.0.s8 %v532
        %v534 = vperm.slane %v528, %v533
        %v536 = vunpack.c.l.s4 1934713408
        %v537 = vunpack.c.0.s8 %v536
        %v538 = vperm.slane %v530, %v537
        %v539 = vrot.slane %v526, 4
        %v540 = vsel %vm320, %v539, %v520
        %v541 = vrot.slane %v520, 4
        %v542 = vsel %vm320, %v526, %v541
        %v544 = vunpack.c.l.s4 1934713408
        %v545 = vunpack.c.0.s8 %v544
        %v546 = vperm.slane %v540, %v545
        %v548 = vunpack.c.l.s4 1934713408
        %v549 = vunpack.c.0.s8 %v548
        %v550 = vperm.slane %v542, %v549
        %v551 = vrot.slane %v546, 4
        %v552 = vsel %vm320, %v551, %v534
        %v553 = vrot.slane %v534, 4
        %v554 = vsel %vm320, %v546, %v553
        %v555 = vrot.slane %v550, 4
        %v556 = vsel %vm320, %v555, %v538
        %v557 = vrot.slane %v538, 4
        %v558 = vsel %vm320, %v550, %v557
        %559 = vrot.lane.b32.xlu0 %v306, 64
        %v560 = vpop.permute.xlu0 %559
        %561 = vrot.lane.b32.xlu0 %v432, 64
        %v562 = vpop.permute.xlu0 %561
        %563 = vrot.lane.b32.xlu0 %v434, 64
        %v564 = vpop.permute.xlu0 %563
        %565 = vrot.lane.b32.xlu0 %v436, 64
        %v566 = vpop.permute.xlu0 %565
        %v571 = vrot.slane %v564, 4
        %v572 = vsel %vm320, %v571, %v560
        %v573 = vrot.slane %v560, 4
        %v574 = vsel %vm320, %v564, %v573
        %v576 = vunpack.c.l.s4 1983009808
        %v577 = vunpack.c.0.s8 %v576
        %v578 = vperm.slane %v572, %v577
        %v580 = vunpack.c.l.s4 1983009808
        %v581 = vunpack.c.0.s8 %v580
        %v582 = vperm.slane %v574, %v581
        %v583 = vrot.slane %v566, 4
        %v584 = vsel %vm320, %v583, %v562
        %v585 = vrot.slane %v562, 4
        %v586 = vsel %vm320, %v566, %v585
        %v588 = vunpack.c.l.s4 1983009808
        %v589 = vunpack.c.0.s8 %v588
        %v590 = vperm.slane %v584, %v589
        %v592 = vunpack.c.l.s4 1983009808
        %v593 = vunpack.c.0.s8 %v592
        %v594 = vperm.slane %v586, %v593
        %v595 = vrot.slane %v590, 4
        %v596 = vsel %vm320, %v595, %v578
        %v597 = vrot.slane %v578, 4
        %v598 = vsel %vm320, %v590, %v597
        %v600 = vunpack.c.l.s4 1934713408
        %v601 = vunpack.c.0.s8 %v600
        %v602 = vperm.slane %v596, %v601
        %v604 = vunpack.c.l.s4 1934713408
        %v605 = vunpack.c.0.s8 %v604
        %v606 = vperm.slane %v598, %v605
        %v607 = vrot.slane %v594, 4
        %v608 = vsel %vm320, %v607, %v582
        %v609 = vrot.slane %v582, 4
        %v610 = vsel %vm320, %v594, %v609
        %v612 = vunpack.c.l.s4 1934713408
        %v613 = vunpack.c.0.s8 %v612
        %v614 = vperm.slane %v608, %v613
        %v616 = vunpack.c.l.s4 1934713408
        %v617 = vunpack.c.0.s8 %v616
        %v618 = vperm.slane %v610, %v617
        %v619 = vrot.slane %v602, 4
        %v620 = vsel %vm320, 0.0, %v619
        %v621 = vrot.slane %v606, 4
        %v622 = vsel %vm320, 0.0, %v621
        %v623 = vrot.slane %v614, 4
        %v624 = vsel %vm320, 0.0, %v623
        %v625 = vrot.slane %v618, 4
        %v626 = vsel %vm320, 0.0, %v625
        %v627 = vsel %vm320, %v621, %v602
        %v629 = vunpack.c.l.s4 1983009808
        %v630 = vunpack.c.0.s8 %v629
        %v631 = vperm.slane %v627, %v630
        %v632 = vrot.slane %v622, 4
        %v633 = vsel %vm320, %v632, %v620
        %v635 = vunpack.c.l.s4 1983009808
        %v636 = vunpack.c.0.s8 %v635
        %v637 = vperm.slane %v633, %v636
        %v638 = vsel %vm320, %v625, %v614
        %v640 = vunpack.c.l.s4 1983009808
        %v641 = vunpack.c.0.s8 %v640
        %v642 = vperm.slane %v638, %v641
        %v643 = vrot.slane %v626, 4
        %v644 = vsel %vm320, %v643, %v624
        %v646 = vunpack.c.l.s4 1983009808
        %v647 = vunpack.c.0.s8 %v646
        %v648 = vperm.slane %v644, %v647
        %v649 = vrot.slane %v637, 4
        %v650 = vsel %vm320, %v649, %v631
        %v651 = vrot.slane %v631, 4
        %v652 = vsel %vm320, %v637, %v651
        %v654 = vunpack.c.l.s4 1934713408
        %v655 = vunpack.c.0.s8 %v654
        %v656 = vperm.slane %v650, %v655
        %v658 = vunpack.c.l.s4 1934713408
        %v659 = vunpack.c.0.s8 %v658
        %v660 = vperm.slane %v652, %v659
        %v661 = vrot.slane %v648, 4
        %v662 = vsel %vm320, %v661, %v642
        %v663 = vrot.slane %v642, 4
        %v664 = vsel %vm320, %v648, %v663
        %v666 = vunpack.c.l.s4 1934713408
        %v667 = vunpack.c.0.s8 %v666
        %v668 = vperm.slane %v662, %v667
        %v670 = vunpack.c.l.s4 1934713408
        %v671 = vunpack.c.0.s8 %v670
        %v672 = vperm.slane %v664, %v671
        %v673 = vrot.slane %v668, 4
        %v674 = vsel %vm320, %v673, %v656
        %v675 = vrot.slane %v656, 4
        %v676 = vsel %vm320, %v668, %v675
        %v677 = vrot.slane %v672, 4
        %v678 = vsel %vm320, %v677, %v660
        %v679 = vrot.slane %v660, 4
        %v680 = vsel %vm320, %v672, %v679
        %vm681 = vcmask 64512
        %v683 = vsel %vm681, %v423, 0
        %v686 = vsel %vm681, %v552, 0
        %688 = vmatpush.xpose.msra.mxu0 0.0
        %689 = vmatpush.xpose.msra.mxu0 0.0
        %690 = vmatpush.xpose.msra.mxu0 0.0
        %691 = vmatpush.xpose.msra.mxu0 0.0
        %692 = vmatpush.xpose.msra.mxu0 0.0
        %693 = vmatpush.xpose.msra.mxu0 0.0
        %694 = vmatpush.xpose.msra.mxu0 0.0
        %695 = vmatpush.xpose.msra.mxu0 0.0
        %696 = vmatpush.xpose.msra.mxu0 0.0
        %697 = vmatpush.xpose.msra.mxu0 0.0
        %698 = vmatpush.xpose.msra.mxu0 0.0
        %699 = vmatpush.xpose.msra.mxu0 0.0
        %700 = vmatpush.xpose.msra.mxu0 0.0
        %701 = vmatpush.xpose.msra.mxu0 0.0
        %702 = vmatpush.xpose.msra.mxu0 0.0
        %703 = vmatpush.xpose.msra.mxu0 %v686
        %704 = vmatmul.f32.gmra.mxu0 %v683
        %v705 = vpop.f32.mrf.mxu0
        %v706 = vadd.f32 0.0, %v705
        %707 = vdwg.mxu0
        %v709 = vsel %vm681, %v425, 0
        %v712 = vsel %vm681, %v554, 0
        %714 = vmatpush.xpose.msra.mxu0 0.0
        %715 = vmatpush.xpose.msra.mxu0 0.0
        %716 = vmatpush.xpose.msra.mxu0 0.0
        %717 = vmatpush.xpose.msra.mxu0 0.0
        %718 = vmatpush.xpose.msra.mxu0 0.0
        %719 = vmatpush.xpose.msra.mxu0 0.0
        %720 = vmatpush.xpose.msra.mxu0 0.0
        %721 = vmatpush.xpose.msra.mxu0 0.0
        %722 = vmatpush.xpose.msra.mxu0 0.0
        %723 = vmatpush.xpose.msra.mxu0 0.0
        %724 = vmatpush.xpose.msra.mxu0 0.0
        %725 = vmatpush.xpose.msra.mxu0 0.0
        %726 = vmatpush.xpose.msra.mxu0 0.0
        %727 = vmatpush.xpose.msra.mxu0 0.0
        %728 = vmatpush.xpose.msra.mxu0 0.0
        %729 = vmatpush.xpose.msra.mxu0 %v712
        %730 = vmatmul.f32.gmra.mxu0 %v709
        %v731 = vpop.f32.mrf.mxu0
        %v732 = vadd.f32 0.0, %v731
        %733 = vdwg.mxu0
        %v735 = vsel %vm681, %v427, 0
        %v738 = vsel %vm681, %v556, 0
        %740 = vmatpush.xpose.msra.mxu0 0.0
        %741 = vmatpush.xpose.msra.mxu0 0.0
        %742 = vmatpush.xpose.msra.mxu0 0.0
        %743 = vmatpush.xpose.msra.mxu0 0.0
        %744 = vmatpush.xpose.msra.mxu0 0.0
        %745 = vmatpush.xpose.msra.mxu0 0.0
        %746 = vmatpush.xpose.msra.mxu0 0.0
        %747 = vmatpush.xpose.msra.mxu0 0.0
        %748 = vmatpush.xpose.msra.mxu0 0.0
        %749 = vmatpush.xpose.msra.mxu0 0.0
        %750 = vmatpush.xpose.msra.mxu0 0.0
        %751 = vmatpush.xpose.msra.mxu0 0.0
        %752 = vmatpush.xpose.msra.mxu0 0.0
        %753 = vmatpush.xpose.msra.mxu0 0.0
        %754 = vmatpush.xpose.msra.mxu0 0.0
        %755 = vmatpush.xpose.msra.mxu0 %v738
        %756 = vmatmul.f32.gmra.mxu0 %v735
        %v757 = vpop.f32.mrf.mxu0
        %v758 = vadd.f32 0.0, %v757
        %759 = vdwg.mxu0
        %v761 = vsel %vm681, %v429, 0
        %v764 = vsel %vm681, %v558, 0
        %766 = vmatpush.xpose.msra.mxu0 0.0
        %767 = vmatpush.xpose.msra.mxu0 0.0
        %768 = vmatpush.xpose.msra.mxu0 0.0
        %769 = vmatpush.xpose.msra.mxu0 0.0
        %770 = vmatpush.xpose.msra.mxu0 0.0
        %771 = vmatpush.xpose.msra.mxu0 0.0
        %772 = vmatpush.xpose.msra.mxu0 0.0
        %773 = vmatpush.xpose.msra.mxu0 0.0
        %774 = vmatpush.xpose.msra.mxu0 0.0
        %775 = vmatpush.xpose.msra.mxu0 0.0
        %776 = vmatpush.xpose.msra.mxu0 0.0
        %777 = vmatpush.xpose.msra.mxu0 0.0
        %778 = vmatpush.xpose.msra.mxu0 0.0
        %779 = vmatpush.xpose.msra.mxu0 0.0
        %780 = vmatpush.xpose.msra.mxu0 0.0
        %781 = vmatpush.xpose.msra.mxu0 %v764
        %782 = vmatmul.f32.gmra.mxu0 %v761
        %v783 = vpop.f32.mrf.mxu0
        %v784 = vadd.f32 0.0, %v783
        %785 = vdwg.mxu0
        %v786 = vsel %vm681, %v706, -inf
        %787 = vmax.xlane.f32.xlu0 %v786
        %v788 = vpop.xlane.xlu0 %787
        %v789 = vsel %vm681, %v732, -inf
        %790 = vmax.xlane.f32.xlu0 %v789
        %v791 = vpop.xlane.xlu0 %790
        %v792 = vsel %vm681, %v758, -inf
        %793 = vmax.xlane.f32.xlu0 %v792
        %v794 = vpop.xlane.xlu0 %793
        %v795 = vsel %vm681, %v784, -inf
        %796 = vmax.xlane.f32.xlu0 %v795
        %v797 = vpop.xlane.xlu0 %796
        %v798 = vsub.f32 %v706, %v788
        %v799 = vsub.f32 %v732, %v791
        %v800 = vsub.f32 %v758, %v794
        %v801 = vsub.f32 %v784, %v797
        %v802 = vmul.f32 %v798, 1.442695
        %v803 = vpow.pop %v802
        %v804 = vmul.f32 %v799, 1.442695
        %v805 = vpow.pop %v804
        %v806 = vmul.f32 %v800, 1.442695
        %v807 = vpow.pop %v806
        %v808 = vmul.f32 %v801, 1.442695
        %v809 = vpow.pop %v808
        %v810 = vsel %vm681, %v803, 0.0
        %811 = vadd.xlane.f32.xlu0 %v810
        %v812 = vpop.xlane.xlu0 %811
        %v813 = vsel %vm681, %v805, 0.0
        %814 = vadd.xlane.f32.xlu0 %v813
        %v815 = vpop.xlane.xlu0 %814
        %v816 = vsel %vm681, %v807, 0.0
        %817 = vadd.xlane.f32.xlu0 %v816
        %v818 = vpop.xlane.xlu0 %817
        %v819 = vsel %vm681, %v809, 0.0
        %820 = vadd.xlane.f32.xlu0 %v819
        %v821 = vpop.xlane.xlu0 %820
        %v822 = vrcp.pop %v812
        %v823 = vmul.f32 %v812, %v822
        %v824 = vsub.f32 1.0, %v823
        %v825 = vmul.f32 %v822, %v824
        %v826 = vadd.f32 %v822, %v825
        %vm827 = vweird.f32 %v812
        %vm828 = vweird.f32 %v822
        %vm829 = vmor %vm827, %vm828
        %v830 = vsel %vm829, %v822, %v826
        %v831 = vand.u32 2147483647, %v812
        %vm832 = vcmp.eq.f32.partialorder %v831, 8.507059e+37
        %v833 = vand.u32 %v812, 2147483648
        %v834 = vor.u32 1.1754944e-38, %v833
        %v835 = vsel %vm832, %v834, %v830
        %v836 = vrcp.pop %v815
        %v837 = vmul.f32 %v815, %v836
        %v838 = vsub.f32 1.0, %v837
        %v839 = vmul.f32 %v836, %v838
        %v840 = vadd.f32 %v836, %v839
        %vm841 = vweird.f32 %v815
        %vm842 = vweird.f32 %v836
        %vm843 = vmor %vm841, %vm842
        %v844 = vsel %vm843, %v836, %v840
        %v845 = vand.u32 2147483647, %v815
        %vm846 = vcmp.eq.f32.partialorder %v845, 8.507059e+37
        %v847 = vand.u32 %v815, 2147483648
        %v848 = vor.u32 1.1754944e-38, %v847
        %v849 = vsel %vm846, %v848, %v844
        %v850 = vrcp.pop %v818
        %v851 = vmul.f32 %v818, %v850
        %v852 = vsub.f32 1.0, %v851
        %v853 = vmul.f32 %v850, %v852
        %v854 = vadd.f32 %v850, %v853
        %vm855 = vweird.f32 %v818
        %vm856 = vweird.f32 %v850
        %vm857 = vmor %vm855, %vm856
        %v858 = vsel %vm857, %v850, %v854
        %v859 = vand.u32 2147483647, %v818
        %vm860 = vcmp.eq.f32.partialorder %v859, 8.507059e+37
        %v861 = vand.u32 %v818, 2147483648
        %v862 = vor.u32 1.1754944e-38, %v861
        %v863 = vsel %vm860, %v862, %v858
        %v864 = vrcp.pop %v821
        %v865 = vmul.f32 %v821, %v864
        %v866 = vsub.f32 1.0, %v865
        %v867 = vmul.f32 %v864, %v866
        %v868 = vadd.f32 %v864, %v867
        %vm869 = vweird.f32 %v821
        %vm870 = vweird.f32 %v864
        %vm871 = vmor %vm869, %vm870
        %v872 = vsel %vm871, %v864, %v868
        %v873 = vand.u32 2147483647, %v821
        %vm874 = vcmp.eq.f32.partialorder %v873, 8.507059e+37
        %v875 = vand.u32 %v821, 2147483648
        %v876 = vor.u32 1.1754944e-38, %v875
        %v877 = vsel %vm874, %v876, %v872
        %v878 = vmul.f32 %v803, %v835
        %v879 = vmul.f32 %v805, %v849
        %v880 = vmul.f32 %v807, %v863
        %v881 = vmul.f32 %v809, %v877
        %v883 = vsel %vm681, %v878, 0
        %885 = vmatpush.msra.mxu0 0.0
        %886 = vmatpush.msra.mxu0 0.0
        %887 = vmatpush.msra.mxu0 0.0
        %888 = vmatpush.msra.mxu0 0.0
        %889 = vmatpush.msra.mxu0 0.0
        %890 = vmatpush.msra.mxu0 0.0
        %891 = vmatpush.msra.mxu0 0.0
        %892 = vmatpush.msra.mxu0 0.0
        %893 = vmatpush.msra.mxu0 0.0
        %894 = vmatpush.msra.mxu0 0.0
        %895 = vmatpush.msra.mxu0 0.0
        %896 = vmatpush.msra.mxu0 0.0
        %897 = vmatpush.msra.mxu0 0.0
        %898 = vmatpush.msra.mxu0 0.0
        %899 = vmatpush.msra.mxu0 0.0
        %900 = vmatpush.msra.mxu0 %v674
        %901 = vmatmul.f32.gmra.mxu0 %v883
        %v902 = vpop.f32.mrf.mxu0
        %v903 = vadd.f32 0.0, %v902
        %904 = vdwg.mxu0
        %v906 = vsel %vm681, %v879, 0
        %908 = vmatpush.msra.mxu0 0.0
        %909 = vmatpush.msra.mxu0 0.0
        %910 = vmatpush.msra.mxu0 0.0
        %911 = vmatpush.msra.mxu0 0.0
        %912 = vmatpush.msra.mxu0 0.0
        %913 = vmatpush.msra.mxu0 0.0
        %914 = vmatpush.msra.mxu0 0.0
        %915 = vmatpush.msra.mxu0 0.0
        %916 = vmatpush.msra.mxu0 0.0
        %917 = vmatpush.msra.mxu0 0.0
        %918 = vmatpush.msra.mxu0 0.0
        %919 = vmatpush.msra.mxu0 0.0
        %920 = vmatpush.msra.mxu0 0.0
        %921 = vmatpush.msra.mxu0 0.0
        %922 = vmatpush.msra.mxu0 0.0
        %923 = vmatpush.msra.mxu0 %v676
        %924 = vmatmul.f32.gmra.mxu0 %v906
        %v925 = vpop.f32.mrf.mxu0
        %v926 = vadd.f32 0.0, %v925
        %927 = vdwg.mxu0
        %v929 = vsel %vm681, %v880, 0
        %931 = vmatpush.msra.mxu0 0.0
        %932 = vmatpush.msra.mxu0 0.0
        %933 = vmatpush.msra.mxu0 0.0
        %934 = vmatpush.msra.mxu0 0.0
        %935 = vmatpush.msra.mxu0 0.0
        %936 = vmatpush.msra.mxu0 0.0
        %937 = vmatpush.msra.mxu0 0.0
        %938 = vmatpush.msra.mxu0 0.0
        %939 = vmatpush.msra.mxu0 0.0
        %940 = vmatpush.msra.mxu0 0.0
        %941 = vmatpush.msra.mxu0 0.0
        %942 = vmatpush.msra.mxu0 0.0
        %943 = vmatpush.msra.mxu0 0.0
        %944 = vmatpush.msra.mxu0 0.0
        %945 = vmatpush.msra.mxu0 0.0
        %946 = vmatpush.msra.mxu0 %v678
        %947 = vmatmul.f32.gmra.mxu0 %v929
        %v948 = vpop.f32.mrf.mxu0
        %v949 = vadd.f32 0.0, %v948
        %950 = vdwg.mxu0
        %v952 = vsel %vm681, %v881, 0
        %954 = vmatpush.msra.mxu0 0.0
        %955 = vmatpush.msra.mxu0 0.0
        %956 = vmatpush.msra.mxu0 0.0
        %957 = vmatpush.msra.mxu0 0.0
        %958 = vmatpush.msra.mxu0 0.0
        %959 = vmatpush.msra.mxu0 0.0
        %960 = vmatpush.msra.mxu0 0.0
        %961 = vmatpush.msra.mxu0 0.0
        %962 = vmatpush.msra.mxu0 0.0
        %963 = vmatpush.msra.mxu0 0.0
        %964 = vmatpush.msra.mxu0 0.0
        %965 = vmatpush.msra.mxu0 0.0
        %966 = vmatpush.msra.mxu0 0.0
        %967 = vmatpush.msra.mxu0 0.0
        %968 = vmatpush.msra.mxu0 0.0
        %969 = vmatpush.msra.mxu0 %v680
        %970 = vmatmul.f32.gmra.mxu0 %v952
        %v971 = vpop.f32.mrf.mxu0
        %v972 = vadd.f32 0.0, %v971
        %973 = vdwg.mxu0
        %v974 = vld [vmem:[#allocation7] sm:$0xff]
        %v975 = vld [vmem:[#allocation7 + $0x8] sm:$0xff]
        %v976 = vld [vmem:[#allocation7 + $0x10] sm:$0xff]
        %v977 = vld [vmem:[#allocation7 + $0x18] sm:$0xff]
        %v979 = vsel %vm681, %v903, 0
        %981 = vmatpush.msra.mxu0 0.0
        %982 = vmatpush.msra.mxu0 0.0
        %983 = vmatpush.msra.mxu0 0.0
        %984 = vmatpush.msra.mxu0 0.0
        %985 = vmatpush.msra.mxu0 0.0
        %986 = vmatpush.msra.mxu0 0.0
        %987 = vmatpush.msra.mxu0 0.0
        %988 = vmatpush.msra.mxu0 0.0
        %989 = vmatpush.msra.mxu0 0.0
        %990 = vmatpush.msra.mxu0 0.0
        %991 = vmatpush.msra.mxu0 0.0
        %992 = vmatpush.msra.mxu0 0.0
        %993 = vmatpush.msra.mxu0 0.0
        %994 = vmatpush.msra.mxu0 0.0
        %995 = vmatpush.msra.mxu0 0.0
        %996 = vmatpush.msra.mxu0 %v974
        %997 = vmatmul.f32.gmra.mxu0 %v979
        %v998 = vpop.f32.mrf.mxu0
        %v999 = vadd.f32 0.0, %v998
        %1000 = vdwg.mxu0
        %v1002 = vsel %vm681, %v926, 0
        %1004 = vmatpush.msra.mxu0 0.0
        %1005 = vmatpush.msra.mxu0 0.0
        %1006 = vmatpush.msra.mxu0 0.0
        %1007 = vmatpush.msra.mxu0 0.0
        %1008 = vmatpush.msra.mxu0 0.0
        %1009 = vmatpush.msra.mxu0 0.0
        %1010 = vmatpush.msra.mxu0 0.0
        %1011 = vmatpush.msra.mxu0 0.0
        %1012 = vmatpush.msra.mxu0 0.0
        %1013 = vmatpush.msra.mxu0 0.0
        %1014 = vmatpush.msra.mxu0 0.0
        %1015 = vmatpush.msra.mxu0 0.0
        %1016 = vmatpush.msra.mxu0 0.0
        %1017 = vmatpush.msra.mxu0 0.0
        %1018 = vmatpush.msra.mxu0 0.0
        %1019 = vmatpush.msra.mxu0 %v975
        %1020 = vmatmul.f32.gmra.mxu0 %v1002
        %v1021 = vpop.f32.mrf.mxu0
        %v1022 = vadd.f32 0.0, %v1021
        %1023 = vdwg.mxu0
        %v1025 = vsel %vm681, %v949, 0
        %1027 = vmatpush.msra.mxu0 0.0
        %1028 = vmatpush.msra.mxu0 0.0
        %1029 = vmatpush.msra.mxu0 0.0
        %1030 = vmatpush.msra.mxu0 0.0
        %1031 = vmatpush.msra.mxu0 0.0
        %1032 = vmatpush.msra.mxu0 0.0
        %1033 = vmatpush.msra.mxu0 0.0
        %1034 = vmatpush.msra.mxu0 0.0
        %1035 = vmatpush.msra.mxu0 0.0
        %1036 = vmatpush.msra.mxu0 0.0
        %1037 = vmatpush.msra.mxu0 0.0
        %1038 = vmatpush.msra.mxu0 0.0
        %1039 = vmatpush.msra.mxu0 0.0
        %1040 = vmatpush.msra.mxu0 0.0
        %1041 = vmatpush.msra.mxu0 0.0
        %1042 = vmatpush.msra.mxu0 %v976
        %1043 = vmatmul.f32.gmra.mxu0 %v1025
        %v1044 = vpop.f32.mrf.mxu0
        %v1045 = vadd.f32 0.0, %v1044
        %1046 = vdwg.mxu0
        %v1048 = vsel %vm681, %v972, 0
        %1050 = vmatpush.msra.mxu0 0.0
        %1051 = vmatpush.msra.mxu0 0.0
        %1052 = vmatpush.msra.mxu0 0.0
        %1053 = vmatpush.msra.mxu0 0.0
        %1054 = vmatpush.msra.mxu0 0.0
        %1055 = vmatpush.msra.mxu0 0.0
        %1056 = vmatpush.msra.mxu0 0.0
        %1057 = vmatpush.msra.mxu0 0.0
        %1058 = vmatpush.msra.mxu0 0.0
        %1059 = vmatpush.msra.mxu0 0.0
        %1060 = vmatpush.msra.mxu0 0.0
        %1061 = vmatpush.msra.mxu0 0.0
        %1062 = vmatpush.msra.mxu0 0.0
        %1063 = vmatpush.msra.mxu0 0.0
        %1064 = vmatpush.msra.mxu0 0.0
        %1065 = vmatpush.msra.mxu0 %v977
        %1066 = vmatmul.f32.gmra.mxu0 %v1048
        %v1067 = vpop.f32.mrf.mxu0
        %v1068 = vadd.f32 0.0, %v1067
        %1069 = vdwg.mxu0
        %v1070 = vsel %vm284, %v999, 0.0
        %v1071 = vsel %vm284, %v1022, 0.0
        %v1072 = vadd.f32 %v1070, %v1071
        %v1073 = vsel %vm284, %v1045, 0.0
        %v1074 = vadd.f32 %v1072, %v1073
        %v1075 = vsel %vm284, %v1068, 0.0
        %v1076 = vadd.f32 %v1074, %v1075
        %v1077 = vld [vmem:[%s4] sm:$0x1]
        %v1079 = vperm.slane %v1077, 0
        %v1081 = vadd.f32 %v1076, %v1079
        %1082 = vst.msk [vmem:[%s274] sm:$0xff] %vm284, %v1081
        %s1083 = sand.u32 %s141, 1
        %s1084 = scalar_lea.sflag [#allocation4], %s1083
        %s1085 = sand.u32 %s141, 1
        %s1086 = smul.addr %s1085, 8
        %s1087 = scalar_lea.vmem [#allocation8], %s1086
        // Predicated region
        $region53: #{tpu_custom_call.1} parent=39 // pred_check
          %p1088 = pneg %p151
        $region54: #{tpu_custom_call.1} parent=39 // pred_check_branch
          %1090 = sbr.rel (%p1088) target = $region56
        $region55: #{tpu_custom_call.1} parent=39 // pred_region
          %1092 = vsyncadd %s1084, 0
          %s1093 = smul.addr %s23, 8
          %s1094 = scalar_lea.hbm %s5, %s1093
          %s1096 = sshll.u32 %s1087, 4
          %s1097 = int_to_ptr.vmem [resolvable:$true] %s1096
          %s1098 = sshll.u32 %s1094, 4
          %s1099 = int_to_ptr.hbm [resolvable:$true] %s1098
          %1101 = dma.vmem_to_hbm [thread:$0]  %s1097, 128, %s1099, %s1084
        $region56: #{tpu_custom_call.1} parent=39 // pred_fallthru
          _
      $region40: #{tpu_custom_call.1} parent=5 // pred_fallthru
        _
      %p1102 = scmp.le.s32.totalorder 2, %s18
      // Predicated region
      $region57: #{tpu_custom_call.1} parent=5 // pred_check
        %p1103 = pneg %p1102
      $region58: #{tpu_custom_call.1} parent=5 // pred_check_branch
        %1105 = sbr.rel (%p1103) target = $region60
      $region59: #{tpu_custom_call.1} parent=5 // pred_region
        %s1106 = ssub.s32 %s18, 2
        // Predicated region
        $region61: #{tpu_custom_call.1} parent=59 // pred_check
          %p1107 = pneg %p157
        $region62: #{tpu_custom_call.1} parent=59 // pred_check_branch
          %1109 = sbr.rel (%p1107) target = $region64
        $region63: #{tpu_custom_call.1} parent=59 // pred_region
          %s1110 = sand.u32 %s142, 1
          %s1111 = scalar_lea.sflag [#allocation4], %s1110
          %s1112 = sand.u32 %s142, 1
          %s1113 = smul.addr %s1112, 8
          %s1114 = scalar_lea.vmem [#allocation8], %s1113
          %1116 = dma.done %s1111, 128
        $region64: #{tpu_custom_call.1} parent=59 // pred_fallthru
          _
      $region60: #{tpu_custom_call.1} parent=5 // pred_fallthru
        _
    $region6: #{tpu_custom_call.1} parent=1 // loop_footer
      %s22 = sadd.s32 1, %s18
    $region7: #{tpu_custom_call.1} parent=1 // loop_footer_branch
      %17 = sbr.rel target = $region3
    $region8: #{tpu_custom_call.1} parent=1 // loop_exit
      _
    %1117 = vsyncpa [#allocation3], 1
    %s1118 = scalar_lea.sflag [#allocation3], 1
    %1119 = vsyncpa %s1118, 1
    %1120 = vsyncpa [#allocation6], 1
    %1121 = vsyncpa [#allocation4], 1
    %s1122 = scalar_lea.sflag [#allocation4], 1
    %1123 = vsyncpa %s1122, 1

</llo_original>
